<compile_context>
chip_gen: v5e
topology: v5e:2x2
jax: 0.10.0
libtpu: 0.0.40
codegen_flags: <defaults>
</compile_context>

<pallas_src>
import jax
import jax.numpy as jnp
from jax.experimental import pallas as pl
from jax.experimental.pallas import tpu as pltpu


def _round_up(x: int, m: int) -> int:
    return (x + m - 1) // m * m


def _make_actor_kernel(h1p: int, h2p: int, ap: int, a_dim: int):
    """Kernel closed over static padded feature widths and the true action dim."""

    def kernel(x_ref, w1_ref, w2_ref, wa_ref, b_ref, out_ref):
        x = x_ref[...]                                              # [BM, S8]
        # hidden layer 1 : relu(x @ W1 + b1)
        h1 = jnp.dot(x, w1_ref[...], preferred_element_type=jnp.float32)
        h1 = jnp.maximum(h1 + b_ref[0:1, :h1p], 0.0)                # [BM, H1P]
        # hidden layer 2 : relu(h1 @ W2 + b2)
        h2 = jnp.dot(h1, w2_ref[...], preferred_element_type=jnp.float32)
        h2 = jnp.maximum(h2 + b_ref[1:2, :h2p], 0.0)                # [BM, H2P]
        # action head : tanh(h2 @ Wa + ba); compute lane-dense, store narrow.
        a = jnp.dot(h2, wa_ref[...], preferred_element_type=jnp.float32)
        a = jnp.tanh(a + b_ref[2:3, :ap])                           # [BM, AP]
        out_ref[...] = a[:, :a_dim]                                 # [BM, A]

    return kernel


def prepare_params(params):
    """One-time padding / stacking of the actor parameters (hoisted out of the
    per-call path). Returns (padded arrays, static dims)."""
    w1, b1, w2, b2, wa, ba = params
    S, H1 = w1.shape
    H2 = w2.shape[1]
    A = wa.shape[1]

    S8 = _round_up(S, 8)          # MXU K dim only needs sublane (8) alignment.
    H1P = _round_up(H1, 128)      # lane-dense matmul widths
    H2P = _round_up(H2, 128)
    AP = _round_up(A, 128)
    P = max(H1P, H2P, AP)

    f32 = jnp.float32
    w1_p = jnp.pad(w1.astype(f32), ((0, S8 - S), (0, H1P - H1)))
    w2_p = jnp.pad(w2.astype(f32), ((0, H1P - H1), (0, H2P - H2)))
    wa_p = jnp.pad(wa.astype(f32), ((0, H2P - H2), (0, AP - A)))
    # Three biases stacked into one VMEM-resident [3, P] slab (1 DMA not 3).
    b_p = jnp.stack(
        [
            jnp.pad(b1.reshape(-1).astype(f32), (0, P - H1)),
            jnp.pad(b2.reshape(-1).astype(f32), (0, P - H2)),
            jnp.pad(ba.reshape(-1).astype(f32), (0, P - A)),
        ],
        axis=0,
    )
    dims = dict(S=S, S8=S8, H1=H1, H2=H2, A=A, H1P=H1P, H2P=H2P, AP=AP, P=P)
    return (w1_p, w2_p, wa_p, b_p), dims


def sac_forward(obs, prepared, dims, *, block_b: int = 512):
    """Fused SACNet.forward (actor mean = tanh(fc_action(actor_body(obs))))."""
    w1_p, w2_p, wa_p, b_p = prepared
    B, S = obs.shape
    assert S == dims["S"], "obs feature dim does not match prepared params"
    S8, H1P, H2P, AP, P, A = (
        dims["S8"], dims["H1P"], dims["H2P"], dims["AP"], dims["P"], dims["A"]
    )

    # Batch tile: split B into ceil(B / block_b) near-equal tiles, 8-aligned,
    # so large batches pipeline (and feed both v7x TCs) while tiny batches
    # stay a single step with minimal row padding.
    n_tiles = max(1, (B + block_b - 1) // block_b)
    BM = _round_up(-(-B // n_tiles), 8)
    BP = _round_up(B, BM)

    obs_p = obs.astype(jnp.float32)
    if BP != B or S8 != S:
        obs_p = jnp.pad(obs_p, ((0, BP - B), (0, S8 - S)))

    grid = (BP // BM,)

    out = pl.pallas_call(
        _make_actor_kernel(H1P, H2P, AP, A),
        out_shape=jax.ShapeDtypeStruct((BP, A), jnp.float32),
        grid=grid,
        in_specs=[
            # obs tile marches with the batch grid axis (double-buffered).
            # Last dim == full array dim, so no 128-lane padding needed.
            pl.BlockSpec((BM, S8), lambda i: (i, 0)),
            # weights / bias slab: constant block index -> fetched once,
            # VMEM-resident for the whole grid.
            pl.BlockSpec((S8, H1P), lambda i: (0, 0)),
            pl.BlockSpec((H1P, H2P), lambda i: (0, 0)),
            pl.BlockSpec((H2P, AP), lambda i: (0, 0)),
            pl.BlockSpec((3, P), lambda i: (0, 0)),
        ],
        # Narrow output: only the true action lanes hit HBM.
        out_specs=pl.BlockSpec((BM, A), lambda i: (i, 0)),
        compiler_params=pltpu.CompilerParams(
            # Batch tiles are independent -> shard across both TCs on v7x.
            dimension_semantics=("parallel",),
        ),
    )(obs_p, w1_p, w2_p, wa_p, b_p)

    return out if BP == B else out[:B]


def init_params(key, state_dim, hidden1, hidden2, action_dim):
    """Deterministic synthetic init mimicking layer_init (scaled weights,
    zero biases). fc_action uses the 0.001 scale from SACNet.__init__."""
    k1, k2, k3 = jax.random.split(key, 3)
    w1 = jax.random.normal(k1, (state_dim, hidden1), jnp.float32) / jnp.sqrt(state_dim)
    b1 = jnp.zeros((1, hidden1), jnp.float32)
    w2 = jax.random.normal(k2, (hidden1, hidden2), jnp.float32) / jnp.sqrt(hidden1)
    b2 = jnp.zeros((1, hidden2), jnp.float32)
    wa = jax.random.normal(k3, (hidden2, action_dim), jnp.float32) * 1e-3
    ba = jnp.zeros((1, action_dim), jnp.float32)
    return (w1, b1, w2, b2, wa, ba)


def sac_forward_ref(obs, params):
    """Pure-JAX reference for correctness check."""
    w1, b1, w2, b2, wa, ba = params
    h1 = jnp.maximum(obs @ w1 + b1, 0.0)
    h2 = jnp.maximum(h1 @ w2 + b2, 0.0)
    return jnp.tanh(h2 @ wa + ba)


if __name__ == "__main__":
    STATE_DIM, H1, H2, ACTION_DIM = 16, 32, 32, 8

    key = jax.random.PRNGKey(0)
    k_obs, k_obs2, k_obs3, k_params = jax.random.split(key, 4)
    params = init_params(k_params, STATE_DIM, H1, H2, ACTION_DIM)
    prepared, dims = prepare_params(params)   # one-time (hoisted) param prep

    # Case 1: tiny inference batch (single grid step, no pad / no slice).
    B = 8
    obs = jax.random.normal(k_obs, (B, STATE_DIM), jnp.float32)
    out = jax.block_until_ready(sac_forward(obs, prepared, dims))
    ref = sac_forward_ref(obs, params)
    assert out.shape == (B, ACTION_DIM)
    assert jnp.allclose(out, ref, atol=1e-5, rtol=1e-5), "mismatch (B=8)"

    # Case 2: batch that is not 8-aligned (exercises row pad + row slice).
    B2 = 260
    obs2 = jax.random.normal(k_obs2, (B2, STATE_DIM), jnp.float32)
    out2 = jax.block_until_ready(sac_forward(obs2, prepared, dims))
    ref2 = sac_forward_ref(obs2, params)
    assert out2.shape == (B2, ACTION_DIM)
    assert jnp.allclose(out2, ref2, atol=1e-5, rtol=1e-5), "mismatch (B=260)"

    # Case 3: batch > block_b (exercises the pipelined multi-step grid).
    B3 = 1030
    obs3 = jax.random.normal(k_obs3, (B3, STATE_DIM), jnp.float32)
    out3 = jax.block_until_ready(sac_forward(obs3, prepared, dims))
    ref3 = sac_forward_ref(obs3, params)
    assert out3.shape == (B3, ACTION_DIM)
    assert jnp.allclose(out3, ref3, atol=1e-5, rtol=1e-5), "mismatch (B=1030)"

    print("KERNEL_OK")
</pallas_src>

<mosaic_0001>
module attributes {stable_mosaic.version = 11 : i64} {
  func.func @kernel(%arg0: i32, %arg1: memref<8x16xf32, #tpu.memory_space<vmem>>, %arg2: memref<16x128xf32, #tpu.memory_space<vmem>>, %arg3: memref<128x128xf32, #tpu.memory_space<vmem>>, %arg4: memref<128x128xf32, #tpu.memory_space<vmem>>, %arg5: memref<3x128xf32, #tpu.memory_space<vmem>>, %arg6: memref<8x8xf32, #tpu.memory_space<vmem>>) attributes {dimension_semantics = [#tpu.dimension_semantics<parallel>], iteration_bounds = array<i64: 1>, scalar_prefetch = 0 : i64, scratch_operands = 0 : i64, tpu.core_type = #tpu.core_type<tc>, window_params = [{transform_indices = @transform_0, window_bounds = array<i64: 8, 16>}, {pipeline_mode = #tpu.pipeline_mode<synchronous>, transform_indices = @transform_1, window_bounds = array<i64: 16, 128>}, {pipeline_mode = #tpu.pipeline_mode<synchronous>, transform_indices = @transform_2, window_bounds = array<i64: 128, 128>}, {pipeline_mode = #tpu.pipeline_mode<synchronous>, transform_indices = @transform_3, window_bounds = array<i64: 128, 128>}, {pipeline_mode = #tpu.pipeline_mode<synchronous>, transform_indices = @transform_4, window_bounds = array<i64: 3, 128>}, {transform_indices = @transform_5, window_bounds = array<i64: 8, 8>}]} {
    %c0 = arith.constant 0 : index
    %c0_0 = arith.constant 0 : index
    %0 = vector.load %arg1[%c0, %c0_0] : memref<8x16xf32, #tpu.memory_space<vmem>>, vector<8x16xf32>
    %c0_1 = arith.constant 0 : index
    %c0_2 = arith.constant 0 : index
    %1 = vector.load %arg2[%c0_1, %c0_2] : memref<16x128xf32, #tpu.memory_space<vmem>>, vector<16x128xf32>
    %cst = arith.constant dense<0.000000e+00> : vector<8x128xf32>
    %2 = tpu.matmul %0, %1, %cst {dimension_numbers = #tpu.dot_dimension_numbers<[1], [0], [0], [1], [0, 0, 1, 1], [], []>} : vector<8x16xf32>, vector<16x128xf32>, vector<8x128xf32> -> vector<8x128xf32>
    %c0_3 = arith.constant 0 : index
    %c0_4 = arith.constant 0 : index
    %3 = vector.load %arg5[%c0_3, %c0_4] : memref<3x128xf32, #tpu.memory_space<vmem>>, vector<1x128xf32>
    %4 = vector.broadcast %3 : vector<1x128xf32> to vector<8x128xf32>
    %5 = arith.addf %2, %4 : vector<8x128xf32>
    %cst_5 = arith.constant 0.000000e+00 : f32
    %6 = vector.broadcast %cst_5 : f32 to vector<8x128xf32>
    %7 = arith.maximumf %5, %6 : vector<8x128xf32>
    %c0_6 = arith.constant 0 : index
    %c0_7 = arith.constant 0 : index
    %8 = vector.load %arg3[%c0_6, %c0_7] : memref<128x128xf32, #tpu.memory_space<vmem>>, vector<128x128xf32>
    %cst_8 = arith.constant dense<0.000000e+00> : vector<8x128xf32>
    %9 = tpu.matmul %7, %8, %cst_8 {dimension_numbers = #tpu.dot_dimension_numbers<[1], [0], [0], [1], [0, 0, 1, 1], [], []>} : vector<8x128xf32>, vector<128x128xf32>, vector<8x128xf32> -> vector<8x128xf32>
    %c1 = arith.constant 1 : index
    %c0_9 = arith.constant 0 : index
    %10 = vector.load %arg5[%c1, %c0_9] : memref<3x128xf32, #tpu.memory_space<vmem>>, vector<1x128xf32>
    %11 = vector.broadcast %10 : vector<1x128xf32> to vector<8x128xf32>
    %12 = arith.addf %9, %11 : vector<8x128xf32>
    %cst_10 = arith.constant 0.000000e+00 : f32
    %13 = vector.broadcast %cst_10 : f32 to vector<8x128xf32>
    %14 = arith.maximumf %12, %13 : vector<8x128xf32>
    %c0_11 = arith.constant 0 : index
    %c0_12 = arith.constant 0 : index
    %15 = vector.load %arg4[%c0_11, %c0_12] : memref<128x128xf32, #tpu.memory_space<vmem>>, vector<128x128xf32>
    %cst_13 = arith.constant dense<0.000000e+00> : vector<8x128xf32>
    %16 = tpu.matmul %14, %15, %cst_13 {dimension_numbers = #tpu.dot_dimension_numbers<[1], [0], [0], [1], [0, 0, 1, 1], [], []>} : vector<8x128xf32>, vector<128x128xf32>, vector<8x128xf32> -> vector<8x128xf32>
    %c2 = arith.constant 2 : index
    %c0_14 = arith.constant 0 : index
    %17 = vector.load %arg5[%c2, %c0_14] : memref<3x128xf32, #tpu.memory_space<vmem>>, vector<1x128xf32>
    %18 = vector.broadcast %17 : vector<1x128xf32> to vector<8x128xf32>
    %19 = arith.addf %16, %18 : vector<8x128xf32>
    %20 = math.tanh %19 : vector<8x128xf32>
    %21 = vector.extract_strided_slice %20 {offsets = [0, 0], sizes = [8, 8], strides = [1, 1]} : vector<8x128xf32> to vector<8x8xf32>
    %c0_15 = arith.constant 0 : index
    %c0_16 = arith.constant 0 : index
    %22 = vector.load %arg6[%c0_15, %c0_16] : memref<8x8xf32, #tpu.memory_space<vmem>>, vector<8x8xf32>
    tpu.vector_store %arg6[%c0_15, %c0_16], %21 {strides = array<i32>} : memref<8x8xf32, #tpu.memory_space<vmem>>, vector<8x8xf32>,
    return
  }
  func.func @transform_0(%arg0: i32) -> (i32, i32) {
    %c0_i32 = arith.constant 0 : i32
    %c0_i32_0 = arith.constant 0 : i32
    return %arg0, %c0_i32 : i32, i32
  }
  func.func @transform_1(%arg0: i32) -> (i32, i32) {
    %c0_i32 = arith.constant 0 : i32
    %c0_i32_0 = arith.constant 0 : i32
    %c0_i32_1 = arith.constant 0 : i32
    return %c0_i32, %c0_i32_0 : i32, i32
  }
  func.func @transform_2(%arg0: i32) -> (i32, i32) {
    %c0_i32 = arith.constant 0 : i32
    %c0_i32_0 = arith.constant 0 : i32
    %c0_i32_1 = arith.constant 0 : i32
    return %c0_i32, %c0_i32_0 : i32, i32
  }
  func.func @transform_3(%arg0: i32) -> (i32, i32) {
    %c0_i32 = arith.constant 0 : i32
    %c0_i32_0 = arith.constant 0 : i32
    %c0_i32_1 = arith.constant 0 : i32
    return %c0_i32, %c0_i32_0 : i32, i32
  }
  func.func @transform_4(%arg0: i32) -> (i32, i32) {
    %c0_i32 = arith.constant 0 : i32
    %c0_i32_0 = arith.constant 0 : i32
    %c0_i32_1 = arith.constant 0 : i32
    return %c0_i32, %c0_i32_0 : i32, i32
  }
  func.func @transform_5(%arg0: i32) -> (i32, i32) {
    %c0_i32 = arith.constant 0 : i32
    %c0_i32_0 = arith.constant 0 : i32
    return %arg0, %c0_i32 : i32, i32
  }
}

</mosaic_0001>

<llo_original>
// kernel: tpu_custom_call.1
$region0: #{tpu_custom_call.1}
  #allocation0 [shape = 'u32[]', space=smem, size = 0x4, offset = 0x4, fixed_abs, tag = 'smem constant byte address 0x4 - core index']
  #allocation1 [shape = 'u32[72,128]{1,0:T(1,128)}', space=vmem, size = 0x9000, scoped, tag = 'internal scratch']
  %s0 = inlined_call_operand.hbm [shape: f32[8,16], index: 0, kind: input, shape index: {}]
  %s1 = inlined_call_operand.hbm [shape: f32[16,128], index: 1, kind: input, shape index: {}]
  %s2 = inlined_call_operand.hbm [shape: f32[128,128], index: 2, kind: input, shape index: {}]
  %s3 = inlined_call_operand.hbm [shape: f32[128,128], index: 3, kind: input, shape index: {}]
  %s4 = inlined_call_operand.hbm [shape: f32[3,128], index: 4, kind: input, shape index: {}]
  %s5 = inlined_call_operand.hbm [shape: f32[8,8], index: 5, kind: output, shape index: {}]
  %s6 = sld [smem:[#allocation0]]
  $region50: #{tpu_custom_call.1} parent=0
    _
  %s8 = ssub.s32 1, %s6
  %s9 = scalar_select 0, %s8, %s6
  $region1: #{tpu_custom_call.1} parent=0
    #allocation2 [shape = 'u8[4096]{0}', space=vmem, size = 0x1000, scoped, tag = 'input window, operand 0, single buffered']
    #allocation3 [shape = 's32[1]{0}', space=sflag, size = 0x4, scoped, tag = 'scoped memory for tpu_custom_call.1']
    #allocation4 [shape = 's32[1]{0}', space=sflag, size = 0x4, scoped, tag = 'scoped memory for tpu_custom_call.1']
    #allocation5 [shape = 'u8[8192]{0}', space=vmem, size = 0x2000, scoped, tag = 'input window, operand 1, single buffered']
    #allocation6 [shape = 's32[1]{0}', space=sflag, size = 0x4, scoped, tag = 'scoped memory for tpu_custom_call.1']
    #allocation7 [shape = 'u8[65536]{0}', space=vmem, size = 0x10000, scoped, tag = 'input window, operand 2, single buffered']
    #allocation8 [shape = 'u8[65536]{0}', space=vmem, size = 0x10000, scoped, tag = 'input window, operand 3, single buffered']
    #allocation9 [shape = 's32[1]{0}', space=sflag, size = 0x4, scoped, tag = 'scoped memory for tpu_custom_call.1']
    #allocation10 [shape = 'u8[2048]{0}', space=vmem, size = 0x800, scoped, tag = 'input window, operand 4, single buffered']
    #allocation11 [shape = 'u8[4096]{0}', space=vmem, size = 0x1000, scoped, tag = 'output window, operand 0, single buffered']
    %10 = vsyncpa [#allocation3], 0
    %11 = vsyncpa [#allocation6], 0
    %12 = vsyncpa [#allocation9], 0
    %13 = vsyncpa [#allocation4], 0
    // Predicated region
    $region2: #{tpu_custom_call.1} parent=1 // pred_check
      _
    $region3: #{tpu_custom_call.1} parent=1 // pred_check_branch
      %15 = sbr.rel (0) target = $region5
    $region4: #{tpu_custom_call.1} parent=1 // pred_region
      %17 = vsyncadd [#allocation3], 0
      %s19 = sshll.u32 %s0, 4
      %s20 = int_to_ptr.hbm [resolvable:$true] %s19
      %s21 = sshll.u32 [#allocation2], 4
      %s22 = int_to_ptr.vmem [resolvable:$true] %s21
      %24 = dma.hbm_to_vmem [thread:$0]  %s20, 128, %s22, [#allocation3]
    $region5: #{tpu_custom_call.1} parent=1 // pred_fallthru
      _
    // Predicated region
    $region6: #{tpu_custom_call.1} parent=1 // pred_check
      _
    $region7: #{tpu_custom_call.1} parent=1 // pred_check_branch
      %26 = sbr.rel (0) target = $region9
    $region8: #{tpu_custom_call.1} parent=1 // pred_region
      %28 = vsyncadd [#allocation6], 0
      %s29 = sshll.u32 %s1, 4
      %s30 = int_to_ptr.hbm [resolvable:$true] %s29
      %s31 = sshll.u32 [#allocation5], 4
      %s32 = int_to_ptr.vmem [resolvable:$true] %s31
      %37 = dma.hbm_to_vmem [thread:$0]  %s30, 256, %s32, [#allocation6], 128, 128, 8
    $region9: #{tpu_custom_call.1} parent=1 // pred_fallthru
      _
    // Predicated region
    $region10: #{tpu_custom_call.1} parent=1 // pred_check
      _
    $region11: #{tpu_custom_call.1} parent=1 // pred_check_branch
      %39 = sbr.rel (0) target = $region13
    $region12: #{tpu_custom_call.1} parent=1 // pred_region
      %41 = vsyncadd [#allocation6], 0
      %s42 = sshll.u32 %s2, 4
      %s43 = int_to_ptr.hbm [resolvable:$true] %s42
      %s44 = sshll.u32 [#allocation7], 4
      %s45 = int_to_ptr.vmem [resolvable:$true] %s44
      %50 = dma.hbm_to_vmem [thread:$0]  %s43, 2048, %s45, [#allocation6], 128, 128, 8
    $region13: #{tpu_custom_call.1} parent=1 // pred_fallthru
      _
    // Predicated region
    $region14: #{tpu_custom_call.1} parent=1 // pred_check
      _
    $region15: #{tpu_custom_call.1} parent=1 // pred_check_branch
      %52 = sbr.rel (0) target = $region17
    $region16: #{tpu_custom_call.1} parent=1 // pred_region
      %54 = vsyncadd [#allocation9], 0
      %s55 = sshll.u32 %s3, 4
      %s56 = int_to_ptr.hbm [resolvable:$true] %s55
      %s57 = sshll.u32 [#allocation8], 4
      %s58 = int_to_ptr.vmem [resolvable:$true] %s57
      %63 = dma.hbm_to_vmem [thread:$0]  %s56, 2048, %s58, [#allocation9], 128, 128, 8
    $region17: #{tpu_custom_call.1} parent=1 // pred_fallthru
      _
    // Predicated region
    $region18: #{tpu_custom_call.1} parent=1 // pred_check
      _
    $region19: #{tpu_custom_call.1} parent=1 // pred_check_branch
      %65 = sbr.rel (0) target = $region21
    $region20: #{tpu_custom_call.1} parent=1 // pred_region
      %67 = vsyncadd [#allocation9], 0
      %s69 = sshll.u32 %s4, 4
      %s70 = int_to_ptr.hbm [resolvable:$true] %s69
      %s71 = sshll.u32 [#allocation10], 4
      %s72 = int_to_ptr.vmem [resolvable:$true] %s71
      %74 = dma.hbm_to_vmem [thread:$0]  %s70, 64, %s72, [#allocation9]
    $region21: #{tpu_custom_call.1} parent=1 // pred_fallthru
      _
    // Predicated region
    $region22: #{tpu_custom_call.1} parent=1 // pred_check
      _
    $region23: #{tpu_custom_call.1} parent=1 // pred_check_branch
      %76 = sbr.rel (0) target = $region25
    $region24: #{tpu_custom_call.1} parent=1 // pred_region
      %78 = dma.done [#allocation3], 128
    $region25: #{tpu_custom_call.1} parent=1 // pred_fallthru
      _
    // Predicated region
    $region26: #{tpu_custom_call.1} parent=1 // pred_check
      _
    $region27: #{tpu_custom_call.1} parent=1 // pred_check_branch
      %80 = sbr.rel (0) target = $region29
    $region28: #{tpu_custom_call.1} parent=1 // pred_region
      %82 = dma.done [#allocation6], 256
    $region29: #{tpu_custom_call.1} parent=1 // pred_fallthru
      _
    // Predicated region
    $region30: #{tpu_custom_call.1} parent=1 // pred_check
      _
    $region31: #{tpu_custom_call.1} parent=1 // pred_check_branch
      %84 = sbr.rel (0) target = $region33
    $region32: #{tpu_custom_call.1} parent=1 // pred_region
      %86 = dma.done [#allocation6], 2048
    $region33: #{tpu_custom_call.1} parent=1 // pred_fallthru
      _
    // Predicated region
    $region34: #{tpu_custom_call.1} parent=1 // pred_check
      _
    $region35: #{tpu_custom_call.1} parent=1 // pred_check_branch
      %88 = sbr.rel (0) target = $region37
    $region36: #{tpu_custom_call.1} parent=1 // pred_region
      %90 = dma.done [#allocation9], 2048
    $region37: #{tpu_custom_call.1} parent=1 // pred_fallthru
      _
    // Predicated region
    $region38: #{tpu_custom_call.1} parent=1 // pred_check
      _
    $region39: #{tpu_custom_call.1} parent=1 // pred_check_branch
      %92 = sbr.rel (0) target = $region41
    $region40: #{tpu_custom_call.1} parent=1 // pred_region
      %94 = dma.done [#allocation9], 64
    $region41: #{tpu_custom_call.1} parent=1 // pred_fallthru
      _
    %v95 = vld [vmem:[#allocation2] sm:$0xff]
    %v96 = vld [vmem:[#allocation5] sm:$0xff]
    %v97 = vld [vmem:[#allocation5 + $0x8] sm:$0xff]
    %v98 = vld [vmem:[#allocation10] sm:$0x1]
    %v99 = vperm.slane %v98, 0
    %vm100 = vcmask 130048
    %v102 = vsel %vm100, %v95, 0
    %104 = vmatpush.msra.mxu0 0.0
    %105 = vmatpush.msra.mxu0 0.0
    %106 = vmatpush.msra.mxu0 0.0
    %107 = vmatpush.msra.mxu0 0.0
    %108 = vmatpush.msra.mxu0 0.0
    %109 = vmatpush.msra.mxu0 0.0
    %110 = vmatpush.msra.mxu0 0.0
    %111 = vmatpush.msra.mxu0 0.0
    %112 = vmatpush.msra.mxu0 0.0
    %113 = vmatpush.msra.mxu0 0.0
    %114 = vmatpush.msra.mxu0 0.0
    %115 = vmatpush.msra.mxu0 0.0
    %116 = vmatpush.msra.mxu0 0.0
    %117 = vmatpush.msra.mxu0 0.0
    %118 = vmatpush.msra.mxu0 %v97
    %119 = vmatpush.msra.mxu0 %v96
    %120 = vmatmul.f32.gmra.mxu0 %v102
    %v121 = vpop.f32.mrf.mxu0
    %v122 = vadd.f32 %v99, %v121
    %123 = vdwg.mxu0
    %v124 = vmax.f32 %v122, 0.0
    %v125 = vld [vmem:[#allocation7] sm:$0xff]
    %v126 = vld [vmem:[#allocation7 + $0x8] sm:$0xff]
    %v127 = vld [vmem:[#allocation7 + $0x10] sm:$0xff]
    %v128 = vld [vmem:[#allocation7 + $0x18] sm:$0xff]
    %v129 = vld [vmem:[#allocation7 + $0x20] sm:$0xff]
    %v130 = vld [vmem:[#allocation7 + $0x28] sm:$0xff]
    %v131 = vld [vmem:[#allocation7 + $0x30] sm:$0xff]
    %v132 = vld [vmem:[#allocation7 + $0x38] sm:$0xff]
    %v133 = vld [vmem:[#allocation7 + $0x40] sm:$0xff]
    %v134 = vld [vmem:[#allocation7 + $0x48] sm:$0xff]
    %v135 = vld [vmem:[#allocation7 + $0x50] sm:$0xff]
    %v136 = vld [vmem:[#allocation7 + $0x58] sm:$0xff]
    %v137 = vld [vmem:[#allocation7 + $0x60] sm:$0xff]
    %v138 = vld [vmem:[#allocation7 + $0x68] sm:$0xff]
    %v139 = vld [vmem:[#allocation7 + $0x70] sm:$0xff]
    %v140 = vld [vmem:[#allocation7 + $0x78] sm:$0xff]
    %v141 = vld [vmem:[#allocation10 + $0x1] sm:$0x1]
    %v142 = vperm.slane %v141, 0
    %143 = vmatpush.msra.mxu0 %v140
    %144 = vmatpush.msra.mxu0 %v139
    %145 = vmatpush.msra.mxu0 %v138
    %146 = vmatpush.msra.mxu0 %v137
    %147 = vmatpush.msra.mxu0 %v136
    %148 = vmatpush.msra.mxu0 %v135
    %149 = vmatpush.msra.mxu0 %v134
    %150 = vmatpush.msra.mxu0 %v133
    %151 = vmatpush.msra.mxu0 %v132
    %152 = vmatpush.msra.mxu0 %v131
    %153 = vmatpush.msra.mxu0 %v130
    %154 = vmatpush.msra.mxu0 %v129
    %155 = vmatpush.msra.mxu0 %v128
    %156 = vmatpush.msra.mxu0 %v127
    %157 = vmatpush.msra.mxu0 %v126
    %158 = vmatpush.msra.mxu0 %v125
    %159 = vmatmul.f32.gmra.mxu0 %v124
    %v160 = vpop.f32.mrf.mxu0
    %v161 = vadd.f32 %v142, %v160
    %162 = vdwg.mxu0
    %v163 = vmax.f32 %v161, 0.0
    %v164 = vld [vmem:[#allocation8] sm:$0xff]
    %v165 = vld [vmem:[#allocation8 + $0x8] sm:$0xff]
    %v166 = vld [vmem:[#allocation8 + $0x10] sm:$0xff]
    %v167 = vld [vmem:[#allocation8 + $0x18] sm:$0xff]
    %v168 = vld [vmem:[#allocation8 + $0x20] sm:$0xff]
    %v169 = vld [vmem:[#allocation8 + $0x28] sm:$0xff]
    %v170 = vld [vmem:[#allocation8 + $0x30] sm:$0xff]
    %v171 = vld [vmem:[#allocation8 + $0x38] sm:$0xff]
    %v172 = vld [vmem:[#allocation8 + $0x40] sm:$0xff]
    %v173 = vld [vmem:[#allocation8 + $0x48] sm:$0xff]
    %v174 = vld [vmem:[#allocation8 + $0x50] sm:$0xff]
    %v175 = vld [vmem:[#allocation8 + $0x58] sm:$0xff]
    %v176 = vld [vmem:[#allocation8 + $0x60] sm:$0xff]
    %v177 = vld [vmem:[#allocation8 + $0x68] sm:$0xff]
    %v178 = vld [vmem:[#allocation8 + $0x70] sm:$0xff]
    %v179 = vld [vmem:[#allocation8 + $0x78] sm:$0xff]
    %v180 = vld [vmem:[#allocation10 + $0x2] sm:$0x1]
    %v181 = vperm.slane %v180, 0
    %182 = vmatpush.msra.mxu0 %v179
    %183 = vmatpush.msra.mxu0 %v178
    %184 = vmatpush.msra.mxu0 %v177
    %185 = vmatpush.msra.mxu0 %v176
    %186 = vmatpush.msra.mxu0 %v175
    %187 = vmatpush.msra.mxu0 %v174
    %188 = vmatpush.msra.mxu0 %v173
    %189 = vmatpush.msra.mxu0 %v172
    %190 = vmatpush.msra.mxu0 %v171
    %191 = vmatpush.msra.mxu0 %v170
    %192 = vmatpush.msra.mxu0 %v169
    %193 = vmatpush.msra.mxu0 %v168
    %194 = vmatpush.msra.mxu0 %v167
    %195 = vmatpush.msra.mxu0 %v166
    %196 = vmatpush.msra.mxu0 %v165
    %197 = vmatpush.msra.mxu0 %v164
    %198 = vmatmul.f32.gmra.mxu0 %v163
    %v199 = vpop.f32.mrf.mxu0
    %v200 = vadd.f32 %v181, %v199
    %201 = vdwg.mxu0
    %v202 = vtanh.pop %v200
    %vm203 = vcmask 64512
    %204 = vst.msk [vmem:[#allocation11] sm:$0xff] %vm203, %v202
    // Predicated region
    $region42: #{tpu_custom_call.1} parent=1 // pred_check
      _
    $region43: #{tpu_custom_call.1} parent=1 // pred_check_branch
      %206 = sbr.rel (0) target = $region45
    $region44: #{tpu_custom_call.1} parent=1 // pred_region
      %208 = vsyncadd [#allocation4], 0
      %s210 = sshll.u32 [#allocation11], 4
      %s211 = int_to_ptr.vmem [resolvable:$true] %s210
      %s212 = sshll.u32 %s5, 4
      %s213 = int_to_ptr.hbm [resolvable:$true] %s212
      %215 = dma.vmem_to_hbm [thread:$0]  %s211, 128, %s213, [#allocation4]
    $region45: #{tpu_custom_call.1} parent=1 // pred_fallthru
      _
    // Predicated region
    $region46: #{tpu_custom_call.1} parent=1 // pred_check
      _
    $region47: #{tpu_custom_call.1} parent=1 // pred_check_branch
      %217 = sbr.rel (0) target = $region49
    $region48: #{tpu_custom_call.1} parent=1 // pred_region
      %219 = dma.done [#allocation4], 128
    $region49: #{tpu_custom_call.1} parent=1 // pred_fallthru
      _
    %220 = vsyncpa [#allocation3], 1
    %221 = vsyncpa [#allocation6], 1
    %222 = vsyncpa [#allocation9], 1
    %223 = vsyncpa [#allocation4], 1

</llo_original>
